<compile_context>
chip_gen: v7x
topology: tpu7x:2x2x1
jax: 0.10.0
libtpu: 0.0.40
codegen_flags: <defaults>
</compile_context>

<pallas_src>
import jax
import jax.numpy as jnp
from jax.experimental import pallas as pl
from jax.experimental.pallas import tpu as pltpu


_LANES = 128
_SUBLANES = 8
_PAD_MULTIPLE = _LANES * _SUBLANES          # 1024 elems -> full (8,128) vregs
_SPLIT_THRESHOLD_BYTES = 2 << 20            # only split for >2 MiB slabs (v7x)


def _identity_kernel(x_ref, o_ref):
    # Pure pass-through: forward(x) = x
    o_ref[...] = x_ref[...]


def _tiling_params():
    """Per-generation (max_tile_rows, vmem_limit_bytes|None, min_grid_steps)."""
    try:
        kind = jax.devices()[0].device_kind.lower()
    except Exception:
        kind = ""
    if "v7" in kind or "7x" in kind:
        # 16384 rows * 128 lanes * 4 B = 8 MiB/block; 4 buffers = 32 MiB, so
        # raise the scoped limit explicitly.  2 TCs -> want >= 2 grid steps.
        return 16384, 48 << 20, 2
    if "v6" in kind:
        # 4 MiB/block; 4 buffers = 16 MiB fits the 32 MiB default limit.
        return 8192, None, 1
    if "v5" in kind:
        # 2 MiB/block; 4 buffers = 8 MiB fits the 16 MiB default limit.
        return 4096, None, 1
    # Unknown backend: conservative defaults.
    return 4096, None, 1


def _round_up(x, m):
    return -(-x // m) * m


def _pallas_identity_2d(x2d, donate):
    rows, lanes = x2d.shape
    itemsize = jnp.dtype(x2d.dtype).itemsize
    max_tile_rows, vmem_limit, min_steps = _tiling_params()

    tile_rows = rows if rows <= max_tile_rows else max_tile_rows

    # On v7x make sure both TensorCores participate for non-trivial slabs.
    num_blocks = pl.cdiv(rows, tile_rows)
    if (min_steps > 1
            and num_blocks < min_steps
            and rows * lanes * itemsize > _SPLIT_THRESHOLD_BYTES):
        tile_rows = _round_up(-(-rows // min_steps), _SUBLANES)
        tile_rows = max(tile_rows, _SUBLANES)
        num_blocks = pl.cdiv(rows, tile_rows)

    grid = (num_blocks,)

    call_kwargs = {}
    if donate:
        # Only alias when the caller guarantees the operand is donatable;
        # otherwise XLA inserts a defensive copy (extra full HBM read+write).
        call_kwargs["input_output_aliases"] = {0: 0}

    return pl.pallas_call(
        _identity_kernel,
        out_shape=jax.ShapeDtypeStruct((rows, lanes), x2d.dtype),
        grid=grid,
        in_specs=[pl.BlockSpec((tile_rows, lanes), lambda i: (i, 0))],
        out_specs=pl.BlockSpec((tile_rows, lanes), lambda i: (i, 0)),
        compiler_params=pltpu.CompilerParams(
            dimension_semantics=("parallel",),
            vmem_limit_bytes=vmem_limit,
        ),
        **call_kwargs,
    )(x2d)


def radial_basis_function_forward(x, gamma=None, centers=None,
                                  use_pallas=False, donate=False):
    """Mirrors RadialBasisFunction.forward: prints the shape, returns x.

    gamma / centers exist in the PyTorch __init__ but are unused in forward,
    so (matching the reference exactly) they do not affect the output.

    Default path (use_pallas=False) is a plain `return x`: the optimal
    identity with zero HBM traffic and no kernel launch.  use_pallas=True
    forces a materializing copy through the Pallas kernel.
    """
    # Match the PyTorch forward's `print(x.shape)` side effect (trace-time
    # only under jit, which matches torch eager only on the first trace).
    # TODO(synk): per-call runtime printing under jit would need
    # jax.debug.print; trace-time print is kept for fidelity/simplicity.
    print(x.shape)

    if not use_pallas:
        return x  # optimal hot path: identity needs no kernel at all

    n = x.size
    if n == 0:
        return x

    padded_n = _round_up(n, _PAD_MULTIPLE)
    flat = x.reshape(-1)
    if padded_n != n:
        flat = jnp.pad(flat, (0, padded_n - n))
    x2d = flat.reshape(padded_n // _LANES, _LANES)   # lane-dense, rows % 8 == 0

    out2d = _pallas_identity_2d(x2d, donate=donate)

    out_flat = out2d.reshape(-1)
    if padded_n != n:
        out_flat = out_flat[:n]
    return out_flat.reshape(x.shape)


if __name__ == "__main__":
    key = jax.random.PRNGKey(0)
    k_x, k_c, k_y = jax.random.split(key, 3)

    # Deterministic example input (NCHW) plus the __init__ parameters
    # (unused in forward, kept for fidelity with the PyTorch module).
    x = jax.random.normal(k_x, (2, 4, 16, 16), dtype=jnp.float32)
    gamma = jnp.float32(0.5)
    centers = jax.random.normal(k_c, (8, 4), dtype=jnp.float32)
    # TODO(synk): the classic RBF exp(-gamma*||x-c||^2) is never computed in
    # the reference forward(), so it is intentionally not implemented here.

    # Exercise the Pallas copy path (x is not donated -> donate=False).
    out = radial_basis_function_forward(x, gamma, centers, use_pallas=True)
    out = jax.block_until_ready(out)
    assert out.shape == x.shape and out.dtype == x.dtype
    assert bool(jnp.array_equal(out, x))

    # Also exercise the non-128-divisible padding path.
    y = jax.random.normal(k_y, (3, 5, 7), dtype=jnp.float32)  # 105 elems
    out_y = radial_basis_function_forward(y, use_pallas=True)
    out_y = jax.block_until_ready(out_y)
    assert out_y.shape == y.shape and bool(jnp.array_equal(out_y, y))

    # Default (optimal) path: pure identity, no kernel.
    out_fast = radial_basis_function_forward(x, gamma, centers)
    assert bool(jnp.array_equal(jax.block_until_ready(out_fast), x))

    print("KERNEL_OK")
</pallas_src>

<mosaic_0001>
module attributes {stable_mosaic.version = 11 : i64} {
  func.func @_identity_kernel(%arg0: i32, %arg1: memref<16x128xf32, #tpu.memory_space<vmem>>, %arg2: memref<16x128xf32, #tpu.memory_space<vmem>>) attributes {dimension_semantics = [#tpu.dimension_semantics<parallel>], iteration_bounds = array<i64: 1>, scalar_prefetch = 0 : i64, scratch_operands = 0 : i64, tpu.core_type = #tpu.core_type<tc>, window_params = [{transform_indices = @transform_0, window_bounds = array<i64: 16, 128>}, {transform_indices = @transform_1, window_bounds = array<i64: 16, 128>}]} {
    %c0 = arith.constant 0 : index
    %c0_0 = arith.constant 0 : index
    %0 = vector.load %arg1[%c0, %c0_0] : memref<16x128xf32, #tpu.memory_space<vmem>>, vector<16x128xf32>
    %c0_1 = arith.constant 0 : index
    %c0_2 = arith.constant 0 : index
    %1 = vector.load %arg2[%c0_1, %c0_2] : memref<16x128xf32, #tpu.memory_space<vmem>>, vector<16x128xf32>
    tpu.vector_store %arg2[%c0_1, %c0_2], %0 {strides = array<i32>} : memref<16x128xf32, #tpu.memory_space<vmem>>, vector<16x128xf32>,
    return
  }
  func.func @transform_0(%arg0: i32) -> (i32, i32) {
    %c0_i32 = arith.constant 0 : i32
    %c0_i32_0 = arith.constant 0 : i32
    return %arg0, %c0_i32 : i32, i32
  }
  func.func @transform_1(%arg0: i32) -> (i32, i32) {
    %c0_i32 = arith.constant 0 : i32
    %c0_i32_0 = arith.constant 0 : i32
    return %arg0, %c0_i32 : i32, i32
  }
}

</mosaic_0001>

<llo_original>
// kernel: tpu_custom_call.1
$region0: #{tpu_custom_call.1}
  #allocation0 [shape = 'u32[]', space=smem, size = 0x4, offset = 0x4, fixed_abs, tag = 'smem constant byte address 0x4 - core index']
  #allocation1 [shape = 'u32[144,128]{1,0:T(1,128)}', space=vmem, size = 0x12000, scoped, tag = 'internal scratch']
  %s0 = inlined_call_operand.hbm [shape: f32[16,128], index: 0, kind: input, shape index: {}]
  %s1 = inlined_call_operand.hbm [shape: f32[16,128], index: 1, kind: output, shape index: {}]
  %s2 = sld [smem:[#allocation0]]
  $region18: #{tpu_custom_call.1} parent=0
    _
  %s4 = ssub.s32 1, %s2
  %s5 = scalar_select 0, %s4, %s2
  $region1: #{tpu_custom_call.1} parent=0
    #allocation2 [shape = 'u8[8192]{0}', space=vmem, size = 0x2000, scoped, tag = 'input window, operand 0, single buffered']
    #allocation3 [shape = 's32[1]{0}', space=sflag, size = 0x4, scoped, tag = 'scoped memory for tpu_custom_call.1']
    #allocation4 [shape = 's32[1]{0}', space=sflag, size = 0x4, scoped, tag = 'scoped memory for tpu_custom_call.1']
    #allocation5 [shape = 'u8[8192]{0}', space=vmem, size = 0x2000, scoped, tag = 'output window, operand 0, single buffered']
    %6 = vsyncpa [#allocation3], 0
    %7 = vsyncpa [#allocation4], 0
    // Predicated region
    $region2: #{tpu_custom_call.1} parent=1 // pred_check
      _
    $region3: #{tpu_custom_call.1} parent=1 // pred_check_branch
      %9 = sbr.rel (0) target = $region5
    $region4: #{tpu_custom_call.1} parent=1 // pred_region
      %s11 = ssub.s32 256, 256
      %12 = vsyncadd [#allocation3], %s11
      %s13 = sshll.u32 [#allocation2], 4
      %s14 = int_to_ptr.vmem [resolvable:$true] %s13
      %19 = dma.hbm_to_vmem [thread:$0]  %s0, 256, %s14, [#allocation3], 128, 128, 8
    $region5: #{tpu_custom_call.1} parent=1 // pred_fallthru
      _
    // Predicated region
    $region6: #{tpu_custom_call.1} parent=1 // pred_check
      _
    $region7: #{tpu_custom_call.1} parent=1 // pred_check_branch
      %21 = sbr.rel (0) target = $region9
    $region8: #{tpu_custom_call.1} parent=1 // pred_region
      %22 = dma.done [#allocation3], 256
    $region9: #{tpu_custom_call.1} parent=1 // pred_fallthru
      _
    %v23 = vld [vmem:[#allocation2] sm:$0xff]
    %v24 = vld [vmem:[#allocation2 + $0x8] sm:$0xff]
    %25 = vst [vmem:[#allocation5] sm:$0xff] %v23
    %26 = vst [vmem:[#allocation5 + $0x8] sm:$0xff] %v24
    // Predicated region
    $region10: #{tpu_custom_call.1} parent=1 // pred_check
      _
    $region11: #{tpu_custom_call.1} parent=1 // pred_check_branch
      %28 = sbr.rel (0) target = $region13
    $region12: #{tpu_custom_call.1} parent=1 // pred_region
      %s30 = ssub.s32 256, 256
      %31 = vsyncadd [#allocation4], %s30
      %s32 = sshll.u32 [#allocation5], 4
      %s33 = int_to_ptr.vmem [resolvable:$true] %s32
      %38 = dma.vmem_to_hbm [thread:$0]  %s33, 256, %s1, [#allocation4], 128, 128, 8
    $region13: #{tpu_custom_call.1} parent=1 // pred_fallthru
      _
    // Predicated region
    $region14: #{tpu_custom_call.1} parent=1 // pred_check
      _
    $region15: #{tpu_custom_call.1} parent=1 // pred_check_branch
      %40 = sbr.rel (0) target = $region17
    $region16: #{tpu_custom_call.1} parent=1 // pred_region
      %41 = dma.done [#allocation4], 256
    $region17: #{tpu_custom_call.1} parent=1 // pred_fallthru
      _
    %42 = vsyncpa [#allocation3], 1
    %43 = vsyncpa [#allocation4], 1

</llo_original>
